<compile_context>
chip_gen: v7x
topology: tpu7x:2x2x1
jax: 0.10.0
libtpu: 0.0.40
codegen_flags: <defaults>
</compile_context>

<pallas_src>
import math

import jax
import jax.numpy as jnp
from jax.experimental import pallas as pl
from jax.experimental.pallas import tpu as pltpu

# ---------------- config (T5Config equivalents, small synthetic sizes) -------
D_MODEL = 32
D_KV = 8
N_HEADS = 4
INNER = N_HEADS * D_KV           # 32
SEQ = 8
BATCH = 2
NUM_BUCKETS = 32
MAX_DISTANCE = 128
LN_EPS = 1e-6
IS_DECODER = False               # bidirectional relative attention bias

# MXU operand dtype: bf16 on v5e/v6e/v7x (accumulation stays f32 via
# preferred_element_type; all softmax / layernorm math is f32 on the VPU/EUP).
MATMUL_DTYPE = jnp.bfloat16


# ---------------- relative position bias (plain-JAX glue) --------------------
def _relative_position_bucket(relative_position, bidirectional=True,
                              num_buckets=32, max_distance=128):
    relative_buckets = jnp.zeros_like(relative_position)
    if bidirectional:
        num_buckets //= 2
        relative_buckets = relative_buckets + (
            (relative_position > 0).astype(jnp.int32) * num_buckets)
        relative_position = jnp.abs(relative_position)
    else:
        relative_position = -jnp.minimum(relative_position,
                                         jnp.zeros_like(relative_position))
    max_exact = num_buckets // 2
    is_small = relative_position < max_exact
    rp_f = relative_position.astype(jnp.float32)
    rel_if_large = max_exact + (
        jnp.log(rp_f / max_exact) / math.log(max_distance / max_exact)
        * (num_buckets - max_exact)).astype(jnp.int32)
    rel_if_large = jnp.minimum(rel_if_large, num_buckets - 1)
    relative_buckets = relative_buckets + jnp.where(
        is_small, relative_position, rel_if_large)
    return relative_buckets


def compute_bias(query_length, key_length, rel_bias_table):
    """Returns position bias of shape (1, n_heads, q_len, k_len)."""
    context_position = jnp.arange(query_length, dtype=jnp.int32)[:, None]
    memory_position = jnp.arange(key_length, dtype=jnp.int32)[None, :]
    relative_position = memory_position - context_position
    buckets = _relative_position_bucket(
        relative_position, bidirectional=not IS_DECODER,
        num_buckets=NUM_BUCKETS, max_distance=MAX_DISTANCE)
    values = rel_bias_table[buckets]                 # (q, k, H)
    values = jnp.transpose(values, (2, 0, 1))[None]  # (1, H, q, k)
    return values


# ---------------- Pallas kernel ----------------------------------------------
def t5_layer_self_attn_kernel(x_ref, ln_w_ref, w_qkv_ref, w_o_ref, bias_ref,
                              out_ref):
    # One batch element per grid step.
    # x_ref:     (S, D)        f32   hidden states
    # ln_w_ref:  (1, D)        f32   T5LayerNorm weight
    # w_qkv_ref: (3*INNER, D)  bf16  rows = [q feats | k feats | v feats] (head-major)
    # w_o_ref:   (INNER, D)    bf16  output projection
    # bias_ref:  (H, S, S)     f32   relative position bias (+ additive mask)
    # out_ref:   (S, D)        f32   hidden + attention output (residual)
    s_len = x_ref.shape[0]
    x = x_ref[...]                                     # f32

    # --- T5LayerNorm (RMS norm: no mean subtraction, no bias); f32 on VPU ---
    var = jnp.mean(x * x, axis=-1, keepdims=True)
    xn = x * jax.lax.rsqrt(var + LN_EPS) * ln_w_ref[...]

    # --- fused Q/K/V projection: ONE 2-D GEMM (bf16 operands, f32 accum).
    # Output is feature-major (3*INNER, S): heads*d_kv on the sublane axis,
    # sequence (the large axis at real sizes) on lanes.
    qkv_t = jnp.einsum("fd,nd->fn",
                       w_qkv_ref[...], xn.astype(MATMUL_DTYPE),
                       preferred_element_type=jnp.float32)     # (3*INNER, S)

    # --- head split: sublane unfold by exact tile multiples (layout-preserving)
    # then free leading-axis slices. No lane slicing / relayout.
    qkv_h = qkv_t.reshape(3 * N_HEADS, D_KV, s_len)            # (3H, D_KV, S)
    q_t = qkv_h[0 * N_HEADS:1 * N_HEADS]                       # (H, D_KV, S)
    k_t = qkv_h[1 * N_HEADS:2 * N_HEADS]
    v_t = qkv_h[2 * N_HEADS:3 * N_HEADS]

    # --- attention scores for all heads at once (T5: no 1/sqrt(d_kv) scale).
    # bias_ref already carries the relative-position bias (+ user mask).
    q_s = jnp.swapaxes(q_t, 1, 2).astype(MATMUL_DTYPE)         # (H, S, D_KV)
    s = jnp.einsum("hqd,hdk->hqk",
                   q_s, k_t.astype(MATMUL_DTYPE),
                   preferred_element_type=jnp.float32)         # (H, S, S)
    s = s + bias_ref[...]

    # --- softmax (f32): exp on EUP, denominator via approx reciprocal (EUP).
    m = jnp.max(s, axis=-1, keepdims=True)
    e = jnp.exp(s - m)
    p = e * pl.reciprocal(jnp.sum(e, axis=-1, keepdims=True), approx=True)

    # --- attention * V, batched over heads, feature-major result (H, D_KV, S).
    o_t = jnp.einsum("hdk,hqk->hdq",
                     v_t.astype(MATMUL_DTYPE), p.astype(MATMUL_DTYPE),
                     preferred_element_type=jnp.float32)

    # --- merge heads (layout-preserving sublane fold) and do the output
    # projection as ONE GEMM with K = INNER (no per-head sum).
    attn_t = o_t.reshape(INNER, s_len)                          # (INNER, S)
    proj = jnp.dot(attn_t.T.astype(MATMUL_DTYPE), w_o_ref[...],
                   preferred_element_type=jnp.float32)          # (S, D)

    # --- residual add (dropout is identity in eval mode) ---
    out_ref[...] = x + proj


# ---------------- wrapper ------------------------------------------------------
def prepare_params(params):
    """One-time (parameter-load-time) weight packing & bf16 casting."""
    w_qkv_rows = jnp.concatenate(
        [params["wq_t"].T, params["wk_t"].T, params["wv_t"].T], axis=0
    ).astype(MATMUL_DTYPE)                                      # (3*INNER, D)
    return {
        "ln_w": params["ln_w"].astype(jnp.float32),             # (1, D)
        "w_qkv_rows": w_qkv_rows,
        "w_o": params["wo_t"].astype(MATMUL_DTYPE),             # (INNER, D)
        "rel_bias": params["rel_bias"],
    }


@jax.jit
def t5_layer_self_attention(hidden_states, packed,
                            attention_mask=None, position_bias=None):
    """Mirrors T5LayerSelfAttention.forward. Returns (hidden_states, position_bias)."""
    B, S, D = hidden_states.shape
    if position_bias is None:
        position_bias = compute_bias(S, S, packed["rel_bias"])   # (1, H, S, S)
        if attention_mask is not None:
            position_bias = position_bias + attention_mask
    bias = jnp.asarray(position_bias, jnp.float32)
    nb = bias.shape[0]          # 1 unless the additive mask carried a batch dim
    bias = jnp.broadcast_to(bias, (nb, N_HEADS, S, S))

    # Advisory cost hint so XLA can overlap the (tiny) wrapper-side work.
    flops = B * (2 * S * D * (3 * INNER)          # QKV projection
                 + 4 * N_HEADS * S * S * D_KV     # scores + attn@V
                 + 2 * S * INNER * D)             # output projection
    transcendentals = B * (N_HEADS * S * S + N_HEADS * S + S)
    bytes_accessed = (hidden_states.size * 4 * 2
                      + packed["ln_w"].size * 4
                      + packed["w_qkv_rows"].size * 2
                      + packed["w_o"].size * 2
                      + bias.size * 4)

    out = pl.pallas_call(
        t5_layer_self_attn_kernel,
        out_shape=jax.ShapeDtypeStruct((B, S, D), jnp.float32),
        grid=(B,),
        in_specs=[
            pl.BlockSpec((None, S, D), lambda b: (b, 0, 0)),         # x[b]
            pl.BlockSpec((1, D), lambda b: (0, 0)),                  # ln weight
            pl.BlockSpec((3 * INNER, D), lambda b: (0, 0)),          # W_qkv
            pl.BlockSpec((INNER, D), lambda b: (0, 0)),              # W_o
            pl.BlockSpec((None, N_HEADS, S, S),                      # bias (shared)
                         lambda b: ((b if nb > 1 else 0), 0, 0, 0)),
        ],
        out_specs=pl.BlockSpec((None, S, D), lambda b: (b, 0, 0)),
        input_output_aliases={0: 0},          # residual: reuse x's buffer for out
        compiler_params=pltpu.CompilerParams(
            dimension_semantics=("parallel",)),   # megacore / v7x 2-TC sharding
        cost_estimate=pl.CostEstimate(flops=flops,
                                      transcendentals=transcendentals,
                                      bytes_accessed=bytes_accessed),
    )(hidden_states, packed["ln_w"], packed["w_qkv_rows"], packed["w_o"], bias)

    return out, position_bias


# ---------------- pure-JAX reference for correctness check -------------------
def reference(hidden_states, params):
    x = hidden_states
    var = jnp.mean(x * x, axis=-1, keepdims=True)
    xn = x * jax.lax.rsqrt(var + LN_EPS) * params["ln_w"][0]
    q = xn @ params["wq_t"]
    k = xn @ params["wk_t"]
    v = xn @ params["wv_t"]
    B, S, _ = x.shape
    qh = q.reshape(B, S, N_HEADS, D_KV).transpose(0, 2, 1, 3)
    kh = k.reshape(B, S, N_HEADS, D_KV).transpose(0, 2, 1, 3)
    vh = v.reshape(B, S, N_HEADS, D_KV).transpose(0, 2, 1, 3)
    scores = jnp.einsum("bhqd,bhkd->bhqk", qh, kh)
    bias = compute_bias(S, S, params["rel_bias"])
    scores = scores + bias
    w = jax.nn.softmax(scores, axis=-1)
    o = jnp.einsum("bhqk,bhkd->bhqd", w, vh)
    o = o.transpose(0, 2, 1, 3).reshape(B, S, INNER)
    return x + o @ params["wo_t"], bias


# ---------------- main --------------------------------------------------------
if __name__ == "__main__":
    key = jax.random.PRNGKey(0)
    ks = jax.random.split(key, 7)

    params = {
        # nn.Linear weight is (out, in); pass transposed (in, out) here
        "wq_t": jax.random.normal(ks[0], (D_MODEL, INNER), jnp.float32) * 0.05,
        "wk_t": jax.random.normal(ks[1], (D_MODEL, INNER), jnp.float32) * 0.05,
        "wv_t": jax.random.normal(ks[2], (D_MODEL, INNER), jnp.float32) * 0.05,
        "wo_t": jax.random.normal(ks[3], (INNER, D_MODEL), jnp.float32) * 0.05,
        # T5LayerNorm weight (initialized ~ones, perturbed for a real check)
        "ln_w": (jnp.ones((1, D_MODEL), jnp.float32)
                 + 0.01 * jax.random.normal(ks[4], (1, D_MODEL), jnp.float32)),
        # relative_attention_bias embedding table (num_buckets, n_heads)
        "rel_bias": jax.random.normal(ks[5], (NUM_BUCKETS, N_HEADS),
                                      jnp.float32) * 0.1,
    }

    hidden_states = jax.random.normal(ks[6], (BATCH, SEQ, D_MODEL), jnp.float32)

    # Reference first (hidden_states is aliased into the kernel output).
    ref_out, ref_bias = reference(hidden_states, params)
    ref_out = jax.block_until_ready(ref_out)

    packed = prepare_params(params)        # one-time, load-time packing/casting

    out, pos_bias = t5_layer_self_attention(hidden_states, packed)
    out = jax.block_until_ready(out)
    pos_bias = jax.block_until_ready(pos_bias)

    assert out.shape == (BATCH, SEQ, D_MODEL)
    assert pos_bias.shape == (1, N_HEADS, SEQ, SEQ)
    # bf16 MXU operands -> looser tolerance; f32 reference stays exact.
    tol = 2e-2 if MATMUL_DTYPE == jnp.bfloat16 else 1e-3
    assert jnp.allclose(out, ref_out, atol=tol, rtol=tol), (
        float(jnp.max(jnp.abs(out - ref_out))))
    assert jnp.allclose(pos_bias, ref_bias, atol=1e-6)

    print("KERNEL_OK")
</pallas_src>

<mosaic_0001>
module attributes {stable_mosaic.version = 11 : i64} {
  func.func @t5_layer_self_attn_kernel(%arg0: i32, %arg1: memref<1x8x32xf32, #tpu.memory_space<vmem>>, %arg2: memref<1x32xf32, #tpu.memory_space<vmem>>, %arg3: memref<96x32xbf16, #tpu.memory_space<vmem>>, %arg4: memref<32x32xbf16, #tpu.memory_space<vmem>>, %arg5: memref<1x4x8x8xf32, #tpu.memory_space<vmem>>, %arg6: memref<1x8x32xf32, #tpu.memory_space<vmem>>) attributes {dimension_semantics = [#tpu.dimension_semantics<parallel>], iteration_bounds = array<i64: 2>, scalar_prefetch = 0 : i64, scratch_operands = 0 : i64, tpu.core_type = #tpu.core_type<tc>, window_params = [{transform_indices = @transform_0, window_bounds = array<i64: 1, 8, 32>}, {pipeline_mode = #tpu.pipeline_mode<synchronous>, transform_indices = @transform_1, window_bounds = array<i64: 1, 32>}, {pipeline_mode = #tpu.pipeline_mode<synchronous>, transform_indices = @transform_2, window_bounds = array<i64: 96, 32>}, {pipeline_mode = #tpu.pipeline_mode<synchronous>, transform_indices = @transform_3, window_bounds = array<i64: 32, 32>}, {pipeline_mode = #tpu.pipeline_mode<synchronous>, transform_indices = @transform_4, window_bounds = array<i64: 1, 4, 8, 8>}, {transform_indices = @transform_5, window_bounds = array<i64: 1, 8, 32>}]} {
    %c0 = arith.constant 0 : index
    %c0_0 = arith.constant 0 : index
    %c0_1 = arith.constant 0 : index
    %0 = vector.load %arg1[%c0, %c0_0, %c0_1] : memref<1x8x32xf32, #tpu.memory_space<vmem>>, vector<1x8x32xf32>
    %1 = vector.shape_cast %0 : vector<1x8x32xf32> to vector<8x32xf32>
    %2 = arith.mulf %1, %1 : vector<8x32xf32>
    %cst = arith.constant dense<0.000000e+00> : vector<8xf32>
    %3 = vector.multi_reduction <add>, %2, %cst [1] : vector<8x32xf32> to vector<8xf32>
    %4 = vector.shape_cast %3 : vector<8xf32> to vector<8x1xf32>
    %cst_2 = arith.constant 3.200000e+01 : f32
    %5 = vector.broadcast %cst_2 : f32 to vector<8x1xf32>
    %6 = arith.divf %4, %5 : vector<8x1xf32>
    %cst_3 = arith.constant 9.99999997E-7 : f32
    %7 = vector.broadcast %cst_3 : f32 to vector<8x1xf32>
    %8 = arith.addf %6, %7 : vector<8x1xf32>
    %9 = math.rsqrt %8 : vector<8x1xf32>
    %10 = vector.broadcast %9 : vector<8x1xf32> to vector<8x32xf32>
    %11 = arith.mulf %1, %10 : vector<8x32xf32>
    %c0_4 = arith.constant 0 : index
    %c0_5 = arith.constant 0 : index
    %12 = vector.load %arg2[%c0_4, %c0_5] : memref<1x32xf32, #tpu.memory_space<vmem>>, vector<1x32xf32>
    %13 = vector.broadcast %12 : vector<1x32xf32> to vector<8x32xf32>
    %14 = arith.mulf %11, %13 : vector<8x32xf32>
    %c0_6 = arith.constant 0 : index
    %c0_7 = arith.constant 0 : index
    %15 = vector.load %arg3[%c0_6, %c0_7] : memref<96x32xbf16, #tpu.memory_space<vmem>>, vector<96x32xbf16>
    %16 = arith.truncf %14 : vector<8x32xf32> to vector<8x32xbf16>
    "tpu.trace_start"() <{level = 10 : i32, message = "fd,nd->fn"}> : () -> ()
    %cst_8 = arith.constant dense<0.000000e+00> : vector<96x8xf32>
    %17 = tpu.matmul %15, %16, %cst_8 {dimension_numbers = #tpu.dot_dimension_numbers<[1], [1], [0], [0], [0, 0, 1, 0], [], []>} : vector<96x32xbf16>, vector<8x32xbf16>, vector<96x8xf32> -> vector<96x8xf32>
    "tpu.trace_stop"() : () -> ()
    %18 = vector.shape_cast %17 : vector<96x8xf32> to vector<12x8x8xf32>
    %19 = vector.extract_strided_slice %18 {offsets = [0, 0, 0], sizes = [4, 8, 8], strides = [1, 1, 1]} : vector<12x8x8xf32> to vector<4x8x8xf32>
    %20 = vector.extract_strided_slice %18 {offsets = [4, 0, 0], sizes = [4, 8, 8], strides = [1, 1, 1]} : vector<12x8x8xf32> to vector<4x8x8xf32>
    %21 = vector.extract_strided_slice %18 {offsets = [8, 0, 0], sizes = [4, 8, 8], strides = [1, 1, 1]} : vector<12x8x8xf32> to vector<4x8x8xf32>
    %22 = tpu.transpose %19, [0, 2, 1] : vector<4x8x8xf32> -> vector<4x8x8xf32>
    %23 = arith.truncf %22 : vector<4x8x8xf32> to vector<4x8x8xbf16>
    %24 = arith.truncf %20 : vector<4x8x8xf32> to vector<4x8x8xbf16>
    "tpu.trace_start"() <{level = 10 : i32, message = "hqd,hdk->hqk"}> : () -> ()
    %cst_9 = arith.constant dense<0.000000e+00> : vector<4x8x8xf32>
    %25 = tpu.matmul %23, %24, %cst_9 {dimension_numbers = #tpu.dot_dimension_numbers<[2], [1], [1], [2], [0, 0, 0, 1, 1, 2], [0], [0]>} : vector<4x8x8xbf16>, vector<4x8x8xbf16>, vector<4x8x8xf32> -> vector<4x8x8xf32>
    "tpu.trace_stop"() : () -> ()
    %c0_10 = arith.constant 0 : index
    %c0_11 = arith.constant 0 : index
    %c0_12 = arith.constant 0 : index
    %c0_13 = arith.constant 0 : index
    %26 = vector.load %arg5[%c0_10, %c0_11, %c0_12, %c0_13] : memref<1x4x8x8xf32, #tpu.memory_space<vmem>>, vector<1x4x8x8xf32>
    %27 = vector.shape_cast %26 : vector<1x4x8x8xf32> to vector<4x8x8xf32>
    %28 = arith.addf %25, %27 : vector<4x8x8xf32>
    %cst_14 = arith.constant dense<0xFF800000> : vector<4x8xf32>
    %29 = vector.multi_reduction <maximumf>, %28, %cst_14 [2] : vector<4x8x8xf32> to vector<4x8xf32>
    %30 = vector.shape_cast %29 : vector<4x8xf32> to vector<4x8x1xf32>
    %31 = vector.broadcast %30 : vector<4x8x1xf32> to vector<4x8x8xf32>
    %32 = arith.subf %28, %31 : vector<4x8x8xf32>
    %33 = math.exp %32 : vector<4x8x8xf32>
    %cst_15 = arith.constant dense<0.000000e+00> : vector<4x8xf32>
    %34 = vector.multi_reduction <add>, %33, %cst_15 [2] : vector<4x8x8xf32> to vector<4x8xf32>
    %35 = vector.shape_cast %34 : vector<4x8xf32> to vector<4x8x1xf32>
    %36 = tpu.reciprocal %35 {approx = true} : vector<4x8x1xf32> -> vector<4x8x1xf32>
    %37 = vector.broadcast %36 : vector<4x8x1xf32> to vector<4x8x8xf32>
    %38 = arith.mulf %33, %37 : vector<4x8x8xf32>
    %39 = arith.truncf %21 : vector<4x8x8xf32> to vector<4x8x8xbf16>
    %40 = arith.truncf %38 : vector<4x8x8xf32> to vector<4x8x8xbf16>
    "tpu.trace_start"() <{level = 10 : i32, message = "hdk,hqk->hdq"}> : () -> ()
    %cst_16 = arith.constant dense<0.000000e+00> : vector<4x8x8xf32>
    %41 = tpu.matmul %39, %40, %cst_16 {dimension_numbers = #tpu.dot_dimension_numbers<[2], [2], [1], [1], [0, 0, 0, 1, 1, 1], [0], [0]>} : vector<4x8x8xbf16>, vector<4x8x8xbf16>, vector<4x8x8xf32> -> vector<4x8x8xf32>
    "tpu.trace_stop"() : () -> ()
    %42 = vector.shape_cast %41 : vector<4x8x8xf32> to vector<32x8xf32>
    %43 = tpu.transpose %42, [1, 0] : vector<32x8xf32> -> vector<8x32xf32>
    %44 = arith.truncf %43 : vector<8x32xf32> to vector<8x32xbf16>
    %c0_17 = arith.constant 0 : index
    %c0_18 = arith.constant 0 : index
    %45 = vector.load %arg4[%c0_17, %c0_18] : memref<32x32xbf16, #tpu.memory_space<vmem>>, vector<32x32xbf16>
    %cst_19 = arith.constant dense<0.000000e+00> : vector<8x32xf32>
    %46 = tpu.matmul %44, %45, %cst_19 {dimension_numbers = #tpu.dot_dimension_numbers<[1], [0], [0], [1], [0, 0, 1, 1], [], []>} : vector<8x32xbf16>, vector<32x32xbf16>, vector<8x32xf32> -> vector<8x32xf32>
    %47 = arith.addf %1, %46 : vector<8x32xf32>
    %c0_20 = arith.constant 0 : index
    %c0_21 = arith.constant 0 : index
    %c0_22 = arith.constant 0 : index
    %48 = vector.load %arg6[%c0_20, %c0_21, %c0_22] : memref<1x8x32xf32, #tpu.memory_space<vmem>>, vector<1x8x32xf32>
    %49 = vector.shape_cast %48 : vector<1x8x32xf32> to vector<8x32xf32>
    %50 = vector.shape_cast %47 : vector<8x32xf32> to vector<1x8x32xf32>
    tpu.vector_store %arg6[%c0_20, %c0_21, %c0_22], %50 {strides = array<i32>} : memref<1x8x32xf32, #tpu.memory_space<vmem>>, vector<1x8x32xf32>,
    return
  }
  func.func @transform_0(%arg0: i32) -> (i32, i32, i32) {
    %c0_i32 = arith.constant 0 : i32
    %c0_i32_0 = arith.constant 0 : i32
    %c0_i32_1 = arith.constant 0 : i32
    return %arg0, %c0_i32, %c0_i32_0 : i32, i32, i32
  }
  func.func @transform_1(%arg0: i32) -> (i32, i32) {
    %c0_i32 = arith.constant 0 : i32
    %c0_i32_0 = arith.constant 0 : i32
    %c0_i32_1 = arith.constant 0 : i32
    return %c0_i32, %c0_i32_0 : i32, i32
  }
  func.func @transform_2(%arg0: i32) -> (i32, i32) {
    %c0_i32 = arith.constant 0 : i32
    %c0_i32_0 = arith.constant 0 : i32
    %c0_i32_1 = arith.constant 0 : i32
    return %c0_i32, %c0_i32_0 : i32, i32
  }
  func.func @transform_3(%arg0: i32) -> (i32, i32) {
    %c0_i32 = arith.constant 0 : i32
    %c0_i32_0 = arith.constant 0 : i32
    %c0_i32_1 = arith.constant 0 : i32
    return %c0_i32, %c0_i32_0 : i32, i32
  }
  func.func @transform_4(%arg0: i32) -> (i32, i32, i32, i32) {
    %c0_i32 = arith.constant 0 : i32
    %c0_i32_0 = arith.constant 0 : i32
    %c0_i32_1 = arith.constant 0 : i32
    %c0_i32_2 = arith.constant 0 : i32
    %c0_i32_3 = arith.constant 0 : i32
    return %c0_i32, %c0_i32_0, %c0_i32_1, %c0_i32_2 : i32, i32, i32, i32
  }
  func.func @transform_5(%arg0: i32) -> (i32, i32, i32) {
    %c0_i32 = arith.constant 0 : i32
    %c0_i32_0 = arith.constant 0 : i32
    %c0_i32_1 = arith.constant 0 : i32
    return %arg0, %c0_i32, %c0_i32_0 : i32, i32, i32
  }
}

</mosaic_0001>

<llo_original>
// kernel: t5_layer_self_attention.1
$region0: #{t5_layer_self_attention.1}
  #allocation0 [shape = 'u32[]', space=smem, size = 0x4, offset = 0x4, fixed_abs, tag = 'smem constant byte address 0x4 - core index']
  #allocation1 [shape = 'u32[144,128]{1,0:T(1,128)}', space=vmem, size = 0x12000, scoped, tag = 'internal scratch']
  %s0 = inlined_call_operand.vmem [shape: f32[2,8,32], index: 0, kind: input, shape index: {}, may-alias: {0,5}]
  %s1 = inlined_call_operand.vmem [shape: f32[1,32], index: 1, kind: input, shape index: {}]
  %s2 = inlined_call_operand.vmem [shape: bf16[96,32], index: 2, kind: input, shape index: {}]
  %s3 = inlined_call_operand.vmem [shape: bf16[32,32], index: 3, kind: input, shape index: {}]
  %s4 = inlined_call_operand.vmem [shape: f32[1,4,8,8], index: 4, kind: input, shape index: {}]
  %s5 = inlined_call_operand.vmem [shape: f32[2,8,32], index: 5, kind: output, shape index: {}, may-alias: {0,5}]
  %s6 = sld [smem:[#allocation0]]
  $region53: #{t5_layer_self_attention.1} parent=0
    _
  %s8 = ssub.s32 1, %s6
  %s9 = scalar_select 0, %s8, %s6
  loop: start=0, step=1, limit=4
  $region2: #{t5_layer_self_attention.1} parent=0 // loop_pre_header
    _
  $region3: #{t5_layer_self_attention.1} parent=0 // loop_header
    %s11 = sphi 0, %s15
    %p12 = scmp.ge.s32.totalorder %s11, 4
    %s21 = sphi 0, %s23
    %s24 = sphi 0, %s21
    %s25 = sphi 0, %s24
    %s41 = sphi 0, %s25
    %s45 = sphi 0, %s45
    %s47 = sphi 0, %s45
    %s48 = sphi 0, %s47
    %s62 = sphi 0, %s48
    %s66 = sphi 0, %s66
    %s68 = sphi 0, %s66
    %s69 = sphi 0, %s68
    %s83 = sphi 0, %s69
    %s87 = sphi 0, %s87
    %s89 = sphi 0, %s87
    %s90 = sphi 0, %s89
    %s104 = sphi 0, %s90
    %s108 = sphi 0, %s108
    %s110 = sphi 0, %s108
    %s111 = sphi 0, %s110
    %s125 = sphi 0, %s111
    %s131 = sphi 0, %s133
    %s134 = sphi 0, %s131
    %s135 = sphi 0, %s134
    %s151 = sphi 0, %s135
  $region4: #{t5_layer_self_attention.1} parent=0 // loop_header_branch
    %14 = sbr.rel (%p12) target = $region8
  $region5: #{t5_layer_self_attention.1} parent=0 // loop_body
    %s16 = ssub.s32 %s11, 1
    %s17 = ssub.s32 %s11, 2
    %s18 = sadd.s32 %s11, 1
    %s19 = ssub.s32 %s11, %s18
    %p20 = scmp.eq.s32.totalorder %s19, 0
    %s22 = sadd.s32 %s21, 1
    %s23 = scalar_select %p20, %s21, %s22
    %p26 = pneg %p20
    %p27 = scmp.eq.s32.totalorder %s11, 1
    %p28 = por %p26, %p27
    %p29 = scmp.ne.s32.totalorder %s21, %s24
    %p30 = scmp.eq.s32.totalorder %s11, 0
    %p31 = por %p29, %p30
    %p32 = scmp.ne.s32.totalorder %s21, %s24
    %p33 = scmp.eq.s32.totalorder %s16, 1
    %p34 = por %p32, %p33
    %p35 = scmp.ne.s32.totalorder %s24, %s25
    %p36 = scmp.eq.s32.totalorder %s16, 0
    %p37 = por %p35, %p36
    %p38 = scmp.ne.s32.totalorder %s24, %s25
    %p39 = scmp.eq.s32.totalorder %s17, 1
    %p40 = por %p38, %p39
    %p42 = scmp.ne.s32.totalorder %s25, %s41
    %p43 = scmp.eq.s32.totalorder %s17, 0
    %p44 = por %p42, %p43
    %s46 = sadd.s32 %s45, 1
    %p49 = scmp.eq.s32.totalorder %s11, 1
    %p50 = scmp.ne.s32.totalorder %s45, %s47
    %p51 = scmp.eq.s32.totalorder %s11, 0
    %p52 = por %p50, %p51
    %p53 = scmp.ne.s32.totalorder %s45, %s47
    %p54 = scmp.eq.s32.totalorder %s16, 1
    %p55 = por %p53, %p54
    %p56 = scmp.ne.s32.totalorder %s47, %s48
    %p57 = scmp.eq.s32.totalorder %s16, 0
    %p58 = por %p56, %p57
    %p59 = scmp.ne.s32.totalorder %s47, %s48
    %p60 = scmp.eq.s32.totalorder %s17, 1
    %p61 = por %p59, %p60
    %p63 = scmp.ne.s32.totalorder %s48, %s62
    %p64 = scmp.eq.s32.totalorder %s17, 0
    %p65 = por %p63, %p64
    %s67 = sadd.s32 %s66, 1
    %p70 = scmp.eq.s32.totalorder %s11, 1
    %p71 = scmp.ne.s32.totalorder %s66, %s68
    %p72 = scmp.eq.s32.totalorder %s11, 0
    %p73 = por %p71, %p72
    %p74 = scmp.ne.s32.totalorder %s66, %s68
    %p75 = scmp.eq.s32.totalorder %s16, 1
    %p76 = por %p74, %p75
    %p77 = scmp.ne.s32.totalorder %s68, %s69
    %p78 = scmp.eq.s32.totalorder %s16, 0
    %p79 = por %p77, %p78
    %p80 = scmp.ne.s32.totalorder %s68, %s69
    %p81 = scmp.eq.s32.totalorder %s17, 1
    %p82 = por %p80, %p81
    %p84 = scmp.ne.s32.totalorder %s69, %s83
    %p85 = scmp.eq.s32.totalorder %s17, 0
    %p86 = por %p84, %p85
    %s88 = sadd.s32 %s87, 1
    %p91 = scmp.eq.s32.totalorder %s11, 1
    %p92 = scmp.ne.s32.totalorder %s87, %s89
    %p93 = scmp.eq.s32.totalorder %s11, 0
    %p94 = por %p92, %p93
    %p95 = scmp.ne.s32.totalorder %s87, %s89
    %p96 = scmp.eq.s32.totalorder %s16, 1
    %p97 = por %p95, %p96
    %p98 = scmp.ne.s32.totalorder %s89, %s90
    %p99 = scmp.eq.s32.totalorder %s16, 0
    %p100 = por %p98, %p99
    %p101 = scmp.ne.s32.totalorder %s89, %s90
    %p102 = scmp.eq.s32.totalorder %s17, 1
    %p103 = por %p101, %p102
    %p105 = scmp.ne.s32.totalorder %s90, %s104
    %p106 = scmp.eq.s32.totalorder %s17, 0
    %p107 = por %p105, %p106
    %s109 = sadd.s32 %s108, 1
    %p112 = scmp.eq.s32.totalorder %s11, 1
    %p113 = scmp.ne.s32.totalorder %s108, %s110
    %p114 = scmp.eq.s32.totalorder %s11, 0
    %p115 = por %p113, %p114
    %p116 = scmp.ne.s32.totalorder %s108, %s110
    %p117 = scmp.eq.s32.totalorder %s16, 1
    %p118 = por %p116, %p117
    %p119 = scmp.ne.s32.totalorder %s110, %s111
    %p120 = scmp.eq.s32.totalorder %s16, 0
    %p121 = por %p119, %p120
    %p122 = scmp.ne.s32.totalorder %s110, %s111
    %p123 = scmp.eq.s32.totalorder %s17, 1
    %p124 = por %p122, %p123
    %p126 = scmp.ne.s32.totalorder %s111, %s125
    %p127 = scmp.eq.s32.totalorder %s17, 0
    %p128 = por %p126, %p127
    %s129 = ssub.s32 %s11, %s18
    %p130 = scmp.eq.s32.totalorder %s129, 0
    %s132 = sadd.s32 %s131, 1
    %s133 = scalar_select %p130, %s131, %s132
    %p136 = pneg %p130
    %p137 = scmp.eq.s32.totalorder %s11, 1
    %p138 = por %p136, %p137
    %p139 = scmp.ne.s32.totalorder %s131, %s134
    %p140 = scmp.eq.s32.totalorder %s11, 0
    %p141 = por %p139, %p140
    %p142 = scmp.ne.s32.totalorder %s131, %s134
    %p143 = scmp.eq.s32.totalorder %s16, 1
    %p144 = por %p142, %p143
    %p145 = scmp.ne.s32.totalorder %s134, %s135
    %p146 = scmp.eq.s32.totalorder %s16, 0
    %p147 = por %p145, %p146
    %p148 = scmp.ne.s32.totalorder %s134, %s135
    %p149 = scmp.eq.s32.totalorder %s17, 1
    %p150 = por %p148, %p149
    %p152 = scmp.ne.s32.totalorder %s135, %s151
    %p153 = scmp.eq.s32.totalorder %s17, 0
    %p154 = por %p152, %p153
    %p155 = scmp.le.s32.totalorder 1, %s11
    %p156 = scmp.lt.s32.totalorder %s11, 3
    %p157 = pnand %p155, %p156
    %p158 = pneg %p157
    // Predicated region
    $region9: #{t5_layer_self_attention.1} parent=5 // pred_check
      _
    $region10: #{t5_layer_self_attention.1} parent=5 // pred_check_branch
      %160 = sbr.rel (%p157) target = $region12
    $region11: #{t5_layer_self_attention.1} parent=5 // pred_region
      %s161 = ssub.s32 %s11, 1
      // Predicated region
      $region13: #{t5_layer_self_attention.1} parent=11 // pred_check
        %p162 = pneg %p58
      $region14: #{t5_layer_self_attention.1} parent=11 // pred_check_branch
        %164 = sbr.rel (%p162) target = $region16
      $region15: #{t5_layer_self_attention.1} parent=11 // pred_region
        _
      $region16: #{t5_layer_self_attention.1} parent=11 // pred_fallthru
        _
      // Predicated region
      $region17: #{t5_layer_self_attention.1} parent=11 // pred_check
        %p165 = pneg %p79
      $region18: #{t5_layer_self_attention.1} parent=11 // pred_check_branch
        %167 = sbr.rel (%p165) target = $region20
      $region19: #{t5_layer_self_attention.1} parent=11 // pred_region
        _
      $region20: #{t5_layer_self_attention.1} parent=11 // pred_fallthru
        _
      // Predicated region
      $region21: #{t5_layer_self_attention.1} parent=11 // pred_check
        %p168 = pneg %p100
      $region22: #{t5_layer_self_attention.1} parent=11 // pred_check_branch
        %170 = sbr.rel (%p168) target = $region24
      $region23: #{t5_layer_self_attention.1} parent=11 // pred_region
        _
      $region24: #{t5_layer_self_attention.1} parent=11 // pred_fallthru
        _
      // Predicated region
      $region25: #{t5_layer_self_attention.1} parent=11 // pred_check
        %p171 = pneg %p121
      $region26: #{t5_layer_self_attention.1} parent=11 // pred_check_branch
        %173 = sbr.rel (%p171) target = $region28
      $region27: #{t5_layer_self_attention.1} parent=11 // pred_region
        _
      $region28: #{t5_layer_self_attention.1} parent=11 // pred_fallthru
        _
    $region12: #{t5_layer_self_attention.1} parent=5 // pred_fallthru
      _
    %p174 = scmp.lt.s32.totalorder %s11, 2
    // Predicated region
    $region29: #{t5_layer_self_attention.1} parent=5 // pred_check
      %p175 = pneg %p174
    $region30: #{t5_layer_self_attention.1} parent=5 // pred_check_branch
      %177 = sbr.rel (%p175) target = $region32
    $region31: #{t5_layer_self_attention.1} parent=5 // pred_region
      // Predicated region
      $region33: #{t5_layer_self_attention.1} parent=31 // pred_check
        %p178 = pneg %p31
      $region34: #{t5_layer_self_attention.1} parent=31 // pred_check_branch
        %180 = sbr.rel (%p178) target = $region36
      $region35: #{t5_layer_self_attention.1} parent=31 // pred_region
        %p181 = scmp.lt.s32.totalorder %s11, 1
        %s182 = scalar_select %p181, %s11, 1
        %s183 = smul.addr %s182, 8
        %s184 = scalar_lea.vmem %s0, %s183
      $region36: #{t5_layer_self_attention.1} parent=31 // pred_fallthru
        _
    $region32: #{t5_layer_self_attention.1} parent=5 // pred_fallthru
      _
    %p185 = scmp.le.s32.totalorder 1, %s11
    %p186 = scmp.lt.s32.totalorder %s11, 3
    %p187 = pnand %p185, %p186
    %p188 = pneg %p187
    // Predicated region
    $region37: #{t5_layer_self_attention.1} parent=5 // pred_check
      _
    $region38: #{t5_layer_self_attention.1} parent=5 // pred_check_branch
      %190 = sbr.rel (%p187) target = $region40
    $region39: #{t5_layer_self_attention.1} parent=5 // pred_region
      %s191 = ssub.s32 %s11, 1
      %p192 = scmp.lt.s32.totalorder %s16, 1
      %s193 = scalar_select %p192, %s16, 1
      %s194 = smul.addr %s193, 8
      %s195 = scalar_lea.vmem %s0, %s194
      %p196 = pneg %p37
      %p197 = pneg %p34
      %p198 = pneg %p58
      %p199 = pneg %p55
      %p200 = pneg %p79
      %p201 = pneg %p76
      %p202 = pneg %p100
      %p203 = pneg %p97
      %p204 = pneg %p121
      %p205 = pneg %p118
      %p206 = pneg %p147
      %p207 = pneg %p144
      %p208 = scmp.lt.s32.totalorder %s16, 1
      %s209 = scalar_select %p208, %s16, 1
      %s210 = smul.addr %s209, 8
      %s211 = scalar_lea.vmem %s5, %s210
      %p212 = scmp.lt.s32.totalorder %s16, 1
      %s213 = scalar_select %p212, %s16, 1
      %s214 = smul.addr %s213, 8
      %s215 = scalar_lea.vmem %s0, %s214
      %p216 = scmp.lt.s32.totalorder %s16, 1
      %s217 = scalar_select %p216, %s16, 1
      %s218 = smul.addr %s217, 8
      %s219 = scalar_lea.vmem %s5, %s218
      %v221 = vld [vmem:[%s215] sm:$0xff]
      %v222 = vmul.f32 %v221, %v221
      %vm223 = vcmask 261120
      %v224 = vsel %vm223, %v222, 0.0
      %225 = vadd.xlane.f32.xlu0 %v224
      %v226 = vpop.xlane.xlu0 %225
      %v227 = vrcp.pop 32.0
      %v228 = vmul.f32 %v226, %v227
      %v229 = vadd.f32 %v228, 1e-06
      %v230 = vrsqrt.pop %v229
      %v231 = vmul.f32 %v221, %v230
      %v232 = vld [vmem:[%s1] sm:$0x1]
      %v234 = vlaneseq
      %v235 = vshrl.u32 %v234, 7
      %v236 = vsub.s32 0, %v235
      %v237 = vrot.slane %v232, %v236
      %v239 = vmul.f32 %v231, %v237
      %v240 = vld [vmem:[%s2] sm:$0xf]
      %v241 = vld [vmem:[%s2 + $0x4] sm:$0xf]
      %v242 = vld [vmem:[%s2 + $0x8] sm:$0xf]
      %v243 = vld [vmem:[%s2 + $0xc] sm:$0xf]
      %v244 = vld [vmem:[%s2 + $0x10] sm:$0xf]
      %v245 = vld [vmem:[%s2 + $0x14] sm:$0xf]
      %v246 = vld [vmem:[%s2 + $0x18] sm:$0xf]
      %v247 = vld [vmem:[%s2 + $0x1c] sm:$0xf]
      %v248 = vld [vmem:[%s2 + $0x20] sm:$0xf]
      %v249 = vld [vmem:[%s2 + $0x24] sm:$0xf]
      %v250 = vld [vmem:[%s2 + $0x28] sm:$0xf]
      %v251 = vld [vmem:[%s2 + $0x2c] sm:$0xf]
      %v252 = vpack.c.bf16 %v239, %v239
      %v265 = vunpack.c.l.b16 %v240
      %v266 = vunpack.c.l.b16 %v241
      %v267 = vunpack.c.l.b16 %v242
      %v268 = vunpack.c.l.b16 %v243
      %v269 = vunpack.c.l.b16 %v244
      %v270 = vunpack.c.l.b16 %v245
      %v271 = vunpack.c.l.b16 %v246
      %v272 = vunpack.c.l.b16 %v247
      %v273 = vunpack.c.l.b16 %v248
      %v274 = vunpack.c.l.b16 %v249
      %v275 = vunpack.c.l.b16 %v250
      %v276 = vunpack.c.l.b16 %v251
      %v277 = vpack.c.b16 %v266, %v265
      %v278 = vpack.c.b16 %v268, %v267
      %v279 = vpack.c.b16 %v270, %v269
      %v280 = vpack.c.b16 %v272, %v271
      %v281 = vpack.c.b16 %v274, %v273
      %v282 = vpack.c.b16 %v276, %v275
      %v284 = vsel %vm223, %v277, 0
      %v287 = vsel %vm223, %v278, 0
      %v290 = vsel %vm223, %v279, 0
      %v293 = vsel %vm223, %v280, 0
      %v296 = vsel %vm223, %v281, 0
      %v299 = vsel %vm223, %v282, 0
      %v302 = vsel %vm223, %v252, 0
      %304 = vmatprep.subr.bf16.mxu0 0
      %305 = vmatpush1.bf16.xpose.msra.mxu0 %v302
      %306 = vmatprep.subr.bf16.mxu0 0
      %307 = vmatpush1.bf16.xpose.msra.mxu0 0
      %308 = vmatprep.subr.bf16.mxu0 0
      %309 = vmatpush1.bf16.xpose.msra.mxu0 0
      %310 = vmatprep.subr.bf16.mxu0 0
      %311 = vmatpush1.bf16.xpose.msra.mxu0 0
      %312 = vmatprep.subr.bf16.mxu0 0
      %313 = vmatpush1.bf16.xpose.msra.mxu0 0
      %314 = vmatprep.subr.bf16.mxu0 0
      %315 = vmatpush1.bf16.xpose.msra.mxu0 0
      %316 = vmatprep.subr.bf16.mxu0 0
      %317 = vmatpush1.bf16.xpose.msra.mxu0 0
      %318 = vmatprep.subr.bf16.mxu0 0
      %319 = vmatpush1.bf16.xpose.msra.mxu0 0
      %320 = vmatprep.subr.bf16.mxu0 0
      %321 = vmatpush1.bf16.xpose.msra.mxu0 0
      %322 = vmatprep.subr.bf16.mxu0 0
      %323 = vmatpush1.bf16.xpose.msra.mxu0 0
      %324 = vmatprep.subr.bf16.mxu0 0
      %325 = vmatpush1.bf16.xpose.msra.mxu0 0
      %326 = vmatprep.subr.bf16.mxu0 0
      %327 = vmatpush1.bf16.xpose.msra.mxu0 0
      %328 = vmatprep.subr.bf16.mxu0 0
      %329 = vmatpush1.bf16.xpose.msra.mxu0 0
      %330 = vmatprep.subr.bf16.mxu0 0
      %331 = vmatpush1.bf16.xpose.msra.mxu0 0
      %332 = vmatprep.subr.bf16.mxu0 0
      %333 = vmatpush1.bf16.xpose.msra.mxu0 0
      %334 = vmatprep.subr.bf16.mxu0 0
      %335 = vmatpush1.bf16.xpose.msra.mxu0 0
      %336 = vmatprep.mubr.bf16.mxu0 0
      %337 = vmatmul.mubr.bf16.gmra.mrb[0].mxu0 %v284
      %v338 = vpop.f32.mrb[0].mxu0
      %v339 = vadd.f32 0.0, %v338
      %v340 = vpop.f32.mrb[0].mxu0
      %v341 = vpop.f32.mrb[0].mxu0
      %v342 = vadd.f32 0.0, %v341
      %v343 = vpop.f32.mrb[0].mxu0
      %344 = vmatprep.mubr.bf16.mxu0 0
      %345 = vmatmul.mubr.bf16.gmra.mrb[0].mxu0 %v287
      %v346 = vpop.f32.mrb[0].mxu0
      %v347 = vadd.f32 0.0, %v346
      %v348 = vpop.f32.mrb[0].mxu0
      %v349 = vpop.f32.mrb[0].mxu0
      %v350 = vadd.f32 0.0, %v349
      %v351 = vpop.f32.mrb[0].mxu0
      %352 = vmatprep.mubr.bf16.mxu0 0
      %353 = vmatmul.mubr.bf16.gmra.mrb[0].mxu0 %v290
      %v354 = vpop.f32.mrb[0].mxu0
      %v355 = vadd.f32 0.0, %v354
      %v356 = vpop.f32.mrb[0].mxu0
      %v357 = vpop.f32.mrb[0].mxu0
      %v358 = vadd.f32 0.0, %v357
      %v359 = vpop.f32.mrb[0].mxu0
      %360 = vmatprep.mubr.bf16.mxu0 0
      %361 = vmatmul.mubr.bf16.gmra.mrb[0].mxu0 %v293
      %v362 = vpop.f32.mrb[0].mxu0
      %v363 = vadd.f32 0.0, %v362
      %v364 = vpop.f32.mrb[0].mxu0
      %v365 = vpop.f32.mrb[0].mxu0
      %v366 = vadd.f32 0.0, %v365
      %v367 = vpop.f32.mrb[0].mxu0
      %368 = vmatprep.mubr.bf16.mxu0 0
      %369 = vmatmul.mubr.bf16.gmra.mrb[0].mxu0 %v296
      %v370 = vpop.f32.mrb[0].mxu0
      %v371 = vadd.f32 0.0, %v370
      %v372 = vpop.f32.mrb[0].mxu0
      %v373 = vpop.f32.mrb[0].mxu0
      %v374 = vadd.f32 0.0, %v373
      %v375 = vpop.f32.mrb[0].mxu0
      %376 = vmatprep.mubr.bf16.mxu0 0
      %377 = vmatmul.mubr.bf16.gmra.mrb[0].mxu0 %v299
      %v378 = vpop.f32.mrb[0].mxu0
      %v379 = vadd.f32 0.0, %v378
      %v380 = vpop.f32.mrb[0].mxu0
      %v381 = vpop.f32.mrb[0].mxu0
      %v382 = vadd.f32 0.0, %v381
      %v383 = vpop.f32.mrb[0].mxu0
      %384 = vdwg.mxu0
      %385 = vxpose.xlu0.b32.start [1/16] %v339, 128
      %386 = vxpose.xlu0.b32.cont [2/16] 0.0, 128
      %387 = vxpose.xlu0.b32.cont [3/16] 0.0, 128
      %388 = vxpose.xlu0.b32.cont [4/16] 0.0, 128
      %389 = vxpose.xlu0.b32.cont [5/16] 0.0, 128
      %390 = vxpose.xlu0.b32.cont [6/16] 0.0, 128
      %391 = vxpose.xlu0.b32.cont [7/16] 0.0, 128
      %392 = vxpose.xlu0.b32.cont [8/16] 0.0, 128
      %393 = vxpose.xlu0.b32.cont [9/16] 0.0, 128
      %394 = vxpose.xlu0.b32.cont [10/16] 0.0, 128
      %395 = vxpose.xlu0.b32.cont [11/16] 0.0, 128
      %396 = vxpose.xlu0.b32.cont [12/16] 0.0, 128
      %397 = vxpose.xlu0.b32.cont [13/16] 0.0, 128
      %398 = vxpose.xlu0.b32.cont [14/16] 0.0, 128
      %399 = vxpose.xlu0.b32.cont [15/16] 0.0, 128
      %400 = vxpose.xlu0.b32.end [16/16] 0.0, 128
      %v401 = vpop.trf.xlu0
      %v402 = vpop.trf.xlu0
      %v403 = vpop.trf.xlu0
      %v404 = vpop.trf.xlu0
      %v405 = vpop.trf.xlu0
      %v406 = vpop.trf.xlu0
      %v407 = vpop.trf.xlu0
      %v408 = vpop.trf.xlu0
      %v409 = vpop.trf.xlu0
      %v410 = vpop.trf.xlu0
      %v411 = vpop.trf.xlu0
      %v412 = vpop.trf.xlu0
      %v413 = vpop.trf.xlu0
      %v414 = vpop.trf.xlu0
      %v415 = vpop.trf.xlu0
      %v416 = vpop.trf.xlu0
      %417 = vxpose.xlu0.b32.start [1/16] %v342, 128
      %418 = vxpose.xlu0.b32.cont [2/16] 0.0, 128
      %419 = vxpose.xlu0.b32.cont [3/16] 0.0, 128
      %420 = vxpose.xlu0.b32.cont [4/16] 0.0, 128
      %421 = vxpose.xlu0.b32.cont [5/16] 0.0, 128
      %422 = vxpose.xlu0.b32.cont [6/16] 0.0, 128
      %423 = vxpose.xlu0.b32.cont [7/16] 0.0, 128
      %424 = vxpose.xlu0.b32.cont [8/16] 0.0, 128
      %425 = vxpose.xlu0.b32.cont [9/16] 0.0, 128
      %426 = vxpose.xlu0.b32.cont [10/16] 0.0, 128
      %427 = vxpose.xlu0.b32.cont [11/16] 0.0, 128
      %428 = vxpose.xlu0.b32.cont [12/16] 0.0, 128
      %429 = vxpose.xlu0.b32.cont [13/16] 0.0, 128
      %430 = vxpose.xlu0.b32.cont [14/16] 0.0, 128
      %431 = vxpose.xlu0.b32.cont [15/16] 0.0, 128
      %432 = vxpose.xlu0.b32.end [16/16] 0.0, 128
      %v433 = vpop.trf.xlu0
      %v434 = vpop.trf.xlu0
      %v435 = vpop.trf.xlu0
      %v436 = vpop.trf.xlu0
      %v437 = vpop.trf.xlu0
      %v438 = vpop.trf.xlu0
      %v439 = vpop.trf.xlu0
      %v440 = vpop.trf.xlu0
      %v441 = vpop.trf.xlu0
      %v442 = vpop.trf.xlu0
      %v443 = vpop.trf.xlu0
      %v444 = vpop.trf.xlu0
      %v445 = vpop.trf.xlu0
      %v446 = vpop.trf.xlu0
      %v447 = vpop.trf.xlu0
      %v448 = vpop.trf.xlu0
      %449 = vxpose.xlu0.b32.start [1/16] %v347, 128
      %450 = vxpose.xlu0.b32.cont [2/16] 0.0, 128
      %451 = vxpose.xlu0.b32.cont [3/16] 0.0, 128
      %452 = vxpose.xlu0.b32.cont [4/16] 0.0, 128
      %453 = vxpose.xlu0.b32.cont [5/16] 0.0, 128
      %454 = vxpose.xlu0.b32.cont [6/16] 0.0, 128
      %455 = vxpose.xlu0.b32.cont [7/16] 0.0, 128
      %456 = vxpose.xlu0.b32.cont [8/16] 0.0, 128
      %457 = vxpose.xlu0.b32.cont [9/16] 0.0, 128
      %458 = vxpose.xlu0.b32.cont [10/16] 0.0, 128
      %459 = vxpose.xlu0.b32.cont [11/16] 0.0, 128
      %460 = vxpose.xlu0.b32.cont [12/16] 0.0, 128
      %461 = vxpose.xlu0.b32.cont [13/16] 0.0, 128
      %462 = vxpose.xlu0.b32.cont [14/16] 0.0, 128
      %463 = vxpose.xlu0.b32.cont [15/16] 0.0, 128
      %464 = vxpose.xlu0.b32.end [16/16] 0.0, 128
      %v465 = vpop.trf.xlu0
      %v466 = vpop.trf.xlu0
      %v467 = vpop.trf.xlu0
      %v468 = vpop.trf.xlu0
      %v469 = vpop.trf.xlu0
      %v470 = vpop.trf.xlu0
      %v471 = vpop.trf.xlu0
      %v472 = vpop.trf.xlu0
      %v473 = vpop.trf.xlu0
      %v474 = vpop.trf.xlu0
      %v475 = vpop.trf.xlu0
      %v476 = vpop.trf.xlu0
      %v477 = vpop.trf.xlu0
      %v478 = vpop.trf.xlu0
      %v479 = vpop.trf.xlu0
      %v480 = vpop.trf.xlu0
      %481 = vxpose.xlu0.b32.start [1/16] %v350, 128
      %482 = vxpose.xlu0.b32.cont [2/16] 0.0, 128
      %483 = vxpose.xlu0.b32.cont [3/16] 0.0, 128
      %484 = vxpose.xlu0.b32.cont [4/16] 0.0, 128
      %485 = vxpose.xlu0.b32.cont [5/16] 0.0, 128
      %486 = vxpose.xlu0.b32.cont [6/16] 0.0, 128
      %487 = vxpose.xlu0.b32.cont [7/16] 0.0, 128
      %488 = vxpose.xlu0.b32.cont [8/16] 0.0, 128
      %489 = vxpose.xlu0.b32.cont [9/16] 0.0, 128
      %490 = vxpose.xlu0.b32.cont [10/16] 0.0, 128
      %491 = vxpose.xlu0.b32.cont [11/16] 0.0, 128
      %492 = vxpose.xlu0.b32.cont [12/16] 0.0, 128
      %493 = vxpose.xlu0.b32.cont [13/16] 0.0, 128
      %494 = vxpose.xlu0.b32.cont [14/16] 0.0, 128
      %495 = vxpose.xlu0.b32.cont [15/16] 0.0, 128
      %496 = vxpose.xlu0.b32.end [16/16] 0.0, 128
      %v497 = vpop.trf.xlu0
      %v498 = vpop.trf.xlu0
      %v499 = vpop.trf.xlu0
      %v500 = vpop.trf.xlu0
      %v501 = vpop.trf.xlu0
      %v502 = vpop.trf.xlu0
      %v503 = vpop.trf.xlu0
      %v504 = vpop.trf.xlu0
      %v505 = vpop.trf.xlu0
      %v506 = vpop.trf.xlu0
      %v507 = vpop.trf.xlu0
      %v508 = vpop.trf.xlu0
      %v509 = vpop.trf.xlu0
      %v510 = vpop.trf.xlu0
      %v511 = vpop.trf.xlu0
      %v512 = vpop.trf.xlu0
      %v513 = vpack.c.bf16 %v401, %v401
      %v514 = vpack.c.bf16 %v433, %v433
      %v515 = vpack.c.bf16 %v465, %v465
      %v516 = vpack.c.bf16 %v497, %v497
      %v517 = vpack.c.bf16 %v355, %v355
      %v518 = vpack.c.bf16 %v358, %v358
      %v519 = vpack.c.bf16 %v363, %v363
      %v520 = vpack.c.bf16 %v366, %v366
      %v521 = vld [vmem:[%s4] sm:$0xff]
      %v522 = vld [vmem:[%s4 + $0x8] sm:$0xff]
      %v523 = vld [vmem:[%s4 + $0x10] sm:$0xff]
      %v524 = vld [vmem:[%s4 + $0x18] sm:$0xff]
      %vm525 = vcmask 64512
      %v527 = vsel %vm525, %v513, 0
      %vm529 = vcmask 1043456
      %v531 = vsel %vm529, %v517, 0
      %533 = vmatprep.subr.bf16.mxu0 0
      %534 = vmatpush1.bf16.msra.mxu0 %v531
      %535 = vmatprep.subr.bf16.mxu0 0
      %536 = vmatpush1.bf16.msra.mxu0 0
      %537 = vmatprep.subr.bf16.mxu0 0
      %538 = vmatpush1.bf16.msra.mxu0 0
      %539 = vmatprep.subr.bf16.mxu0 0
      %540 = vmatpush1.bf16.msra.mxu0 0
      %541 = vmatprep.subr.bf16.mxu0 0
      %542 = vmatpush1.bf16.msra.mxu0 0
      %543 = vmatprep.subr.bf16.mxu0 0
      %544 = vmatpush1.bf16.msra.mxu0 0
      %545 = vmatprep.subr.bf16.mxu0 0
      %546 = vmatpush1.bf16.msra.mxu0 0
      %547 = vmatprep.subr.bf16.mxu0 0
      %548 = vmatpush1.bf16.msra.mxu0 0
      %549 = vmatprep.subr.bf16.mxu0 0
      %550 = vmatpush1.bf16.msra.mxu0 0
      %551 = vmatprep.subr.bf16.mxu0 0
      %552 = vmatpush1.bf16.msra.mxu0 0
      %553 = vmatprep.subr.bf16.mxu0 0
      %554 = vmatpush1.bf16.msra.mxu0 0
      %555 = vmatprep.subr.bf16.mxu0 0
      %556 = vmatpush1.bf16.msra.mxu0 0
      %557 = vmatprep.subr.bf16.mxu0 0
      %558 = vmatpush1.bf16.msra.mxu0 0
      %559 = vmatprep.subr.bf16.mxu0 0
      %560 = vmatpush1.bf16.msra.mxu0 0
      %561 = vmatprep.subr.bf16.mxu0 0
      %562 = vmatpush1.bf16.msra.mxu0 0
      %563 = vmatprep.subr.bf16.mxu0 0
      %564 = vmatpush1.bf16.msra.mxu0 0
      %565 = vmatprep.mubr.bf16.mxu0 0
      %566 = vmatmul.mubr.bf16.gmra.mrb[0].mxu0 %v527
      %v567 = vpop.f32.mrb[0].mxu0
      %v568 = vadd.f32 %v521, %v567
      %v569 = vpop.f32.mrb[0].mxu0
      %v570 = vpop.f32.mrb[0].mxu0
      %v571 = vpop.f32.mrb[0].mxu0
      %572 = vdwg.mxu0
      %v574 = vsel %vm525, %v514, 0
      %v577 = vsel %vm529, %v518, 0
      %579 = vmatprep.subr.bf16.mxu0 0
      %580 = vmatpush1.bf16.msra.mxu0 %v577
      %581 = vmatprep.subr.bf16.mxu0 0
      %582 = vmatpush1.bf16.msra.mxu0 0
      %583 = vmatprep.subr.bf16.mxu0 0
      %584 = vmatpush1.bf16.msra.mxu0 0
      %585 = vmatprep.subr.bf16.mxu0 0
      %586 = vmatpush1.bf16.msra.mxu0 0
      %587 = vmatprep.subr.bf16.mxu0 0
      %588 = vmatpush1.bf16.msra.mxu0 0
      %589 = vmatprep.subr.bf16.mxu0 0
      %590 = vmatpush1.bf16.msra.mxu0 0
      %591 = vmatprep.subr.bf16.mxu0 0
      %592 = vmatpush1.bf16.msra.mxu0 0
      %593 = vmatprep.subr.bf16.mxu0 0
      %594 = vmatpush1.bf16.msra.mxu0 0
      %595 = vmatprep.subr.bf16.mxu0 0
      %596 = vmatpush1.bf16.msra.mxu0 0
      %597 = vmatprep.subr.bf16.mxu0 0
      %598 = vmatpush1.bf16.msra.mxu0 0
      %599 = vmatprep.subr.bf16.mxu0 0
      %600 = vmatpush1.bf16.msra.mxu0 0
      %601 = vmatprep.subr.bf16.mxu0 0
      %602 = vmatpush1.bf16.msra.mxu0 0
      %603 = vmatprep.subr.bf16.mxu0 0
      %604 = vmatpush1.bf16.msra.mxu0 0
      %605 = vmatprep.subr.bf16.mxu0 0
      %606 = vmatpush1.bf16.msra.mxu0 0
      %607 = vmatprep.subr.bf16.mxu0 0
      %608 = vmatpush1.bf16.msra.mxu0 0
      %609 = vmatprep.subr.bf16.mxu0 0
      %610 = vmatpush1.bf16.msra.mxu0 0
      %611 = vmatprep.mubr.bf16.mxu0 0
      %612 = vmatmul.mubr.bf16.gmra.mrb[0].mxu0 %v574
      %v613 = vpop.f32.mrb[0].mxu0
      %v614 = vadd.f32 %v522, %v613
      %v615 = vpop.f32.mrb[0].mxu0
      %v616 = vpop.f32.mrb[0].mxu0
      %v617 = vpop.f32.mrb[0].mxu0
      %618 = vdwg.mxu0
      %v620 = vsel %vm525, %v515, 0
      %v623 = vsel %vm529, %v519, 0
      %625 = vmatprep.subr.bf16.mxu0 0
      %626 = vmatpush1.bf16.msra.mxu0 %v623
      %627 = vmatprep.subr.bf16.mxu0 0
      %628 = vmatpush1.bf16.msra.mxu0 0
      %629 = vmatprep.subr.bf16.mxu0 0
      %630 = vmatpush1.bf16.msra.mxu0 0
      %631 = vmatprep.subr.bf16.mxu0 0
      %632 = vmatpush1.bf16.msra.mxu0 0
      %633 = vmatprep.subr.bf16.mxu0 0
      %634 = vmatpush1.bf16.msra.mxu0 0
      %635 = vmatprep.subr.bf16.mxu0 0
      %636 = vmatpush1.bf16.msra.mxu0 0
      %637 = vmatprep.subr.bf16.mxu0 0
      %638 = vmatpush1.bf16.msra.mxu0 0
      %639 = vmatprep.subr.bf16.mxu0 0
      %640 = vmatpush1.bf16.msra.mxu0 0
      %641 = vmatprep.subr.bf16.mxu0 0
      %642 = vmatpush1.bf16.msra.mxu0 0
      %643 = vmatprep.subr.bf16.mxu0 0
      %644 = vmatpush1.bf16.msra.mxu0 0
      %645 = vmatprep.subr.bf16.mxu0 0
      %646 = vmatpush1.bf16.msra.mxu0 0
      %647 = vmatprep.subr.bf16.mxu0 0
      %648 = vmatpush1.bf16.msra.mxu0 0
      %649 = vmatprep.subr.bf16.mxu0 0
      %650 = vmatpush1.bf16.msra.mxu0 0
      %651 = vmatprep.subr.bf16.mxu0 0
      %652 = vmatpush1.bf16.msra.mxu0 0
      %653 = vmatprep.subr.bf16.mxu0 0
      %654 = vmatpush1.bf16.msra.mxu0 0
      %655 = vmatprep.subr.bf16.mxu0 0
      %656 = vmatpush1.bf16.msra.mxu0 0
      %657 = vmatprep.mubr.bf16.mxu0 0
      %658 = vmatmul.mubr.bf16.gmra.mrb[0].mxu0 %v620
      %v659 = vpop.f32.mrb[0].mxu0
      %v660 = vadd.f32 %v523, %v659
      %v661 = vpop.f32.mrb[0].mxu0
      %v662 = vpop.f32.mrb[0].mxu0
      %v663 = vpop.f32.mrb[0].mxu0
      %664 = vdwg.mxu0
      %v666 = vsel %vm525, %v516, 0
      %v669 = vsel %vm529, %v520, 0
      %671 = vmatprep.subr.bf16.mxu0 0
      %672 = vmatpush1.bf16.msra.mxu0 %v669
      %673 = vmatprep.subr.bf16.mxu0 0
      %674 = vmatpush1.bf16.msra.mxu0 0
      %675 = vmatprep.subr.bf16.mxu0 0
      %676 = vmatpush1.bf16.msra.mxu0 0
      %677 = vmatprep.subr.bf16.mxu0 0
      %678 = vmatpush1.bf16.msra.mxu0 0
      %679 = vmatprep.subr.bf16.mxu0 0
      %680 = vmatpush1.bf16.msra.mxu0 0
      %681 = vmatprep.subr.bf16.mxu0 0
      %682 = vmatpush1.bf16.msra.mxu0 0
      %683 = vmatprep.subr.bf16.mxu0 0
      %684 = vmatpush1.bf16.msra.mxu0 0
      %685 = vmatprep.subr.bf16.mxu0 0
      %686 = vmatpush1.bf16.msra.mxu0 0
      %687 = vmatprep.subr.bf16.mxu0 0
      %688 = vmatpush1.bf16.msra.mxu0 0
      %689 = vmatprep.subr.bf16.mxu0 0
      %690 = vmatpush1.bf16.msra.mxu0 0
      %691 = vmatprep.subr.bf16.mxu0 0
      %692 = vmatpush1.bf16.msra.mxu0 0
      %693 = vmatprep.subr.bf16.mxu0 0
      %694 = vmatpush1.bf16.msra.mxu0 0
      %695 = vmatprep.subr.bf16.mxu0 0
      %696 = vmatpush1.bf16.msra.mxu0 0
      %697 = vmatprep.subr.bf16.mxu0 0
      %698 = vmatpush1.bf16.msra.mxu0 0
      %699 = vmatprep.subr.bf16.mxu0 0
      %700 = vmatpush1.bf16.msra.mxu0 0
      %701 = vmatprep.subr.bf16.mxu0 0
      %702 = vmatpush1.bf16.msra.mxu0 0
      %703 = vmatprep.mubr.bf16.mxu0 0
      %704 = vmatmul.mubr.bf16.gmra.mrb[0].mxu0 %v666
      %v705 = vpop.f32.mrb[0].mxu0
      %v706 = vadd.f32 %v524, %v705
      %v707 = vpop.f32.mrb[0].mxu0
      %v708 = vpop.f32.mrb[0].mxu0
      %v709 = vpop.f32.mrb[0].mxu0
      %710 = vdwg.mxu0
      %v711 = vsel %vm525, %v568, -inf
      %712 = vmax.xlane.f32.xlu0 %v711
      %v713 = vpop.xlane.xlu0 %712
      %v714 = vsel %vm525, %v614, -inf
      %715 = vmax.xlane.f32.xlu0 %v714
      %v716 = vpop.xlane.xlu0 %715
      %v717 = vsel %vm525, %v660, -inf
      %718 = vmax.xlane.f32.xlu0 %v717
      %v719 = vpop.xlane.xlu0 %718
      %v720 = vsel %vm525, %v706, -inf
      %721 = vmax.xlane.f32.xlu0 %v720
      %v722 = vpop.xlane.xlu0 %721
      %v723 = vsub.f32 %v568, %v713
      %v724 = vsub.f32 %v614, %v716
      %v725 = vsub.f32 %v660, %v719
      %v726 = vsub.f32 %v706, %v722
      %v727 = vmul.f32 %v723, 1.442695
      %v728 = vpow.pop %v727
      %v729 = vmul.f32 %v724, 1.442695
      %v730 = vpow.pop %v729
      %v731 = vmul.f32 %v725, 1.442695
      %v732 = vpow.pop %v731
      %v733 = vmul.f32 %v726, 1.442695
      %v734 = vpow.pop %v733
      %v735 = vsel %vm525, %v728, 0.0
      %736 = vadd.xlane.f32.xlu0 %v735
      %v737 = vpop.xlane.xlu0 %736
      %v738 = vsel %vm525, %v730, 0.0
      %739 = vadd.xlane.f32.xlu0 %v738
      %v740 = vpop.xlane.xlu0 %739
      %v741 = vsel %vm525, %v732, 0.0
      %742 = vadd.xlane.f32.xlu0 %v741
      %v743 = vpop.xlane.xlu0 %742
      %v744 = vsel %vm525, %v734, 0.0
      %745 = vadd.xlane.f32.xlu0 %v744
      %v746 = vpop.xlane.xlu0 %745
      %v747 = vrcp.pop %v737
      %v748 = vrcp.pop %v740
      %v749 = vrcp.pop %v743
      %v750 = vrcp.pop %v746
      %v751 = vmul.f32 %v728, %v747
      %v752 = vmul.f32 %v730, %v748
      %v753 = vmul.f32 %v732, %v749
      %v754 = vmul.f32 %v734, %v750
      %v755 = vpack.c.bf16 %v371, %v371
      %v756 = vpack.c.bf16 %v374, %v374
      %v757 = vpack.c.bf16 %v379, %v379
      %v758 = vpack.c.bf16 %v382, %v382
      %v759 = vpack.c.bf16 %v751, %v751
      %v760 = vpack.c.bf16 %v752, %v752
      %v761 = vpack.c.bf16 %v753, %v753
      %v762 = vpack.c.bf16 %v754, %v754
      %v764 = vsel %vm525, %v755, 0
      %v767 = vsel %vm525, %v759, 0
      %769 = vmatprep.subr.bf16.mxu0 0
      %770 = vmatpush1.bf16.xpose.msra.mxu0 %v767
      %771 = vmatprep.subr.bf16.mxu0 0
      %772 = vmatpush1.bf16.xpose.msra.mxu0 0
      %773 = vmatprep.subr.bf16.mxu0 0
      %774 = vmatpush1.bf16.xpose.msra.mxu0 0
      %775 = vmatprep.subr.bf16.mxu0 0
      %776 = vmatpush1.bf16.xpose.msra.mxu0 0
      %777 = vmatprep.subr.bf16.mxu0 0
      %778 = vmatpush1.bf16.xpose.msra.mxu0 0
      %779 = vmatprep.subr.bf16.mxu0 0
      %780 = vmatpush1.bf16.xpose.msra.mxu0 0
      %781 = vmatprep.subr.bf16.mxu0 0
      %782 = vmatpush1.bf16.xpose.msra.mxu0 0
      %783 = vmatprep.subr.bf16.mxu0 0
      %784 = vmatpush1.bf16.xpose.msra.mxu0 0
      %785 = vmatprep.subr.bf16.mxu0 0
      %786 = vmatpush1.bf16.xpose.msra.mxu0 0
      %787 = vmatprep.subr.bf16.mxu0 0
      %788 = vmatpush1.bf16.xpose.msra.mxu0 0
      %789 = vmatprep.subr.bf16.mxu0 0
      %790 = vmatpush1.bf16.xpose.msra.mxu0 0
      %791 = vmatprep.subr.bf16.mxu0 0
      %792 = vmatpush1.bf16.xpose.msra.mxu0 0
      %793 = vmatprep.subr.bf16.mxu0 0
      %794 = vmatpush1.bf16.xpose.msra.mxu0 0
      %795 = vmatprep.subr.bf16.mxu0 0
      %796 = vmatpush1.bf16.xpose.msra.mxu0 0
      %797 = vmatprep.subr.bf16.mxu0 0
      %798 = vmatpush1.bf16.xpose.msra.mxu0 0
      %799 = vmatprep.subr.bf16.mxu0 0
      %800 = vmatpush1.bf16.xpose.msra.mxu0 0
      %801 = vmatprep.mubr.bf16.mxu0 0
      %802 = vmatmul.mubr.bf16.gmra.mrb[0].mxu0 %v764
      %v803 = vpop.f32.mrb[0].mxu0
      %v804 = vadd.f32 0.0, %v803
      %v805 = vpop.f32.mrb[0].mxu0
      %v806 = vpop.f32.mrb[0].mxu0
      %v807 = vpop.f32.mrb[0].mxu0
      %808 = vdwg.mxu0
      %v810 = vsel %vm525, %v756, 0
      %v813 = vsel %vm525, %v760, 0
      %815 = vmatprep.subr.bf16.mxu0 0
      %816 = vmatpush1.bf16.xpose.msra.mxu0 %v813
      %817 = vmatprep.subr.bf16.mxu0 0
      %818 = vmatpush1.bf16.xpose.msra.mxu0 0
      %819 = vmatprep.subr.bf16.mxu0 0
      %820 = vmatpush1.bf16.xpose.msra.mxu0 0
      %821 = vmatprep.subr.bf16.mxu0 0
      %822 = vmatpush1.bf16.xpose.msra.mxu0 0
      %823 = vmatprep.subr.bf16.mxu0 0
      %824 = vmatpush1.bf16.xpose.msra.mxu0 0
      %825 = vmatprep.subr.bf16.mxu0 0
      %826 = vmatpush1.bf16.xpose.msra.mxu0 0
      %827 = vmatprep.subr.bf16.mxu0 0
      %828 = vmatpush1.bf16.xpose.msra.mxu0 0
      %829 = vmatprep.subr.bf16.mxu0 0
      %830 = vmatpush1.bf16.xpose.msra.mxu0 0
      %831 = vmatprep.subr.bf16.mxu0 0
      %832 = vmatpush1.bf16.xpose.msra.mxu0 0
      %833 = vmatprep.subr.bf16.mxu0 0
      %834 = vmatpush1.bf16.xpose.msra.mxu0 0
      %835 = vmatprep.subr.bf16.mxu0 0
      %836 = vmatpush1.bf16.xpose.msra.mxu0 0
      %837 = vmatprep.subr.bf16.mxu0 0
      %838 = vmatpush1.bf16.xpose.msra.mxu0 0
      %839 = vmatprep.subr.bf16.mxu0 0
      %840 = vmatpush1.bf16.xpose.msra.mxu0 0
      %841 = vmatprep.subr.bf16.mxu0 0
      %842 = vmatpush1.bf16.xpose.msra.mxu0 0
      %843 = vmatprep.subr.bf16.mxu0 0
      %844 = vmatpush1.bf16.xpose.msra.mxu0 0
      %845 = vmatprep.subr.bf16.mxu0 0
      %846 = vmatpush1.bf16.xpose.msra.mxu0 0
      %847 = vmatprep.mubr.bf16.mxu0 0
      %848 = vmatmul.mubr.bf16.gmra.mrb[0].mxu0 %v810
      %v849 = vpop.f32.mrb[0].mxu0
      %v850 = vadd.f32 0.0, %v849
      %v851 = vpop.f32.mrb[0].mxu0
      %v852 = vpop.f32.mrb[0].mxu0
      %v853 = vpop.f32.mrb[0].mxu0
      %854 = vdwg.mxu0
      %v856 = vsel %vm525, %v757, 0
      %v859 = vsel %vm525, %v761, 0
      %861 = vmatprep.subr.bf16.mxu0 0
      %862 = vmatpush1.bf16.xpose.msra.mxu0 %v859
      %863 = vmatprep.subr.bf16.mxu0 0
      %864 = vmatpush1.bf16.xpose.msra.mxu0 0
      %865 = vmatprep.subr.bf16.mxu0 0
      %866 = vmatpush1.bf16.xpose.msra.mxu0 0
      %867 = vmatprep.subr.bf16.mxu0 0
      %868 = vmatpush1.bf16.xpose.msra.mxu0 0
      %869 = vmatprep.subr.bf16.mxu0 0
      %870 = vmatpush1.bf16.xpose.msra.mxu0 0
      %871 = vmatprep.subr.bf16.mxu0 0
      %872 = vmatpush1.bf16.xpose.msra.mxu0 0
      %873 = vmatprep.subr.bf16.mxu0 0
      %874 = vmatpush1.bf16.xpose.msra.mxu0 0
      %875 = vmatprep.subr.bf16.mxu0 0
      %876 = vmatpush1.bf16.xpose.msra.mxu0 0
      %877 = vmatprep.subr.bf16.mxu0 0
      %878 = vmatpush1.bf16.xpose.msra.mxu0 0
      %879 = vmatprep.subr.bf16.mxu0 0
      %880 = vmatpush1.bf16.xpose.msra.mxu0 0
      %881 = vmatprep.subr.bf16.mxu0 0
      %882 = vmatpush1.bf16.xpose.msra.mxu0 0
      %883 = vmatprep.subr.bf16.mxu0 0
      %884 = vmatpush1.bf16.xpose.msra.mxu0 0
      %885 = vmatprep.subr.bf16.mxu0 0
      %886 = vmatpush1.bf16.xpose.msra.mxu0 0
      %887 = vmatprep.subr.bf16.mxu0 0
      %888 = vmatpush1.bf16.xpose.msra.mxu0 0
      %889 = vmatprep.subr.bf16.mxu0 0
      %890 = vmatpush1.bf16.xpose.msra.mxu0 0
      %891 = vmatprep.subr.bf16.mxu0 0
      %892 = vmatpush1.bf16.xpose.msra.mxu0 0
      %893 = vmatprep.mubr.bf16.mxu0 0
      %894 = vmatmul.mubr.bf16.gmra.mrb[0].mxu0 %v856
      %v895 = vpop.f32.mrb[0].mxu0
      %v896 = vadd.f32 0.0, %v895
      %v897 = vpop.f32.mrb[0].mxu0
      %v898 = vpop.f32.mrb[0].mxu0
      %v899 = vpop.f32.mrb[0].mxu0
      %900 = vdwg.mxu0
      %v902 = vsel %vm525, %v758, 0
      %v905 = vsel %vm525, %v762, 0
      %907 = vmatprep.subr.bf16.mxu0 0
      %908 = vmatpush1.bf16.xpose.msra.mxu0 %v905
      %909 = vmatprep.subr.bf16.mxu0 0
      %910 = vmatpush1.bf16.xpose.msra.mxu0 0
      %911 = vmatprep.subr.bf16.mxu0 0
      %912 = vmatpush1.bf16.xpose.msra.mxu0 0
      %913 = vmatprep.subr.bf16.mxu0 0
      %914 = vmatpush1.bf16.xpose.msra.mxu0 0
      %915 = vmatprep.subr.bf16.mxu0 0
      %916 = vmatpush1.bf16.xpose.msra.mxu0 0
      %917 = vmatprep.subr.bf16.mxu0 0
      %918 = vmatpush1.bf16.xpose.msra.mxu0 0
      %919 = vmatprep.subr.bf16.mxu0 0
      %920 = vmatpush1.bf16.xpose.msra.mxu0 0
      %921 = vmatprep.subr.bf16.mxu0 0
      %922 = vmatpush1.bf16.xpose.msra.mxu0 0
      %923 = vmatprep.subr.bf16.mxu0 0
      %924 = vmatpush1.bf16.xpose.msra.mxu0 0
      %925 = vmatprep.subr.bf16.mxu0 0
      %926 = vmatpush1.bf16.xpose.msra.mxu0 0
      %927 = vmatprep.subr.bf16.mxu0 0
      %928 = vmatpush1.bf16.xpose.msra.mxu0 0
      %929 = vmatprep.subr.bf16.mxu0 0
      %930 = vmatpush1.bf16.xpose.msra.mxu0 0
      %931 = vmatprep.subr.bf16.mxu0 0
      %932 = vmatpush1.bf16.xpose.msra.mxu0 0
      %933 = vmatprep.subr.bf16.mxu0 0
      %934 = vmatpush1.bf16.xpose.msra.mxu0 0
      %935 = vmatprep.subr.bf16.mxu0 0
      %936 = vmatpush1.bf16.xpose.msra.mxu0 0
      %937 = vmatprep.subr.bf16.mxu0 0
      %938 = vmatpush1.bf16.xpose.msra.mxu0 0
      %939 = vmatprep.mubr.bf16.mxu0 0
      %940 = vmatmul.mubr.bf16.gmra.mrb[0].mxu0 %v902
      %v941 = vpop.f32.mrb[0].mxu0
      %v942 = vadd.f32 0.0, %v941
      %v943 = vpop.f32.mrb[0].mxu0
      %v944 = vpop.f32.mrb[0].mxu0
      %v945 = vpop.f32.mrb[0].mxu0
      %946 = vdwg.mxu0
      %947 = vxpose.xlu0.b32.start [1/16] %v804, 128
      %948 = vxpose.xlu0.b32.cont [2/16] %v850, 128
      %949 = vxpose.xlu0.b32.cont [3/16] %v896, 128
      %950 = vxpose.xlu0.b32.cont [4/16] %v942, 128
      %951 = vxpose.xlu0.b32.cont [5/16] 0.0, 128
      %952 = vxpose.xlu0.b32.cont [6/16] 0.0, 128
      %953 = vxpose.xlu0.b32.cont [7/16] 0.0, 128
      %954 = vxpose.xlu0.b32.cont [8/16] 0.0, 128
      %955 = vxpose.xlu0.b32.cont [9/16] 0.0, 128
      %956 = vxpose.xlu0.b32.cont [10/16] 0.0, 128
      %957 = vxpose.xlu0.b32.cont [11/16] 0.0, 128
      %958 = vxpose.xlu0.b32.cont [12/16] 0.0, 128
      %959 = vxpose.xlu0.b32.cont [13/16] 0.0, 128
      %960 = vxpose.xlu0.b32.cont [14/16] 0.0, 128
      %961 = vxpose.xlu0.b32.cont [15/16] 0.0, 128
      %962 = vxpose.xlu0.b32.end [16/16] 0.0, 128
      %v963 = vpop.trf.xlu0
      %v964 = vpop.trf.xlu0
      %v965 = vpop.trf.xlu0
      %v966 = vpop.trf.xlu0
      %v967 = vpop.trf.xlu0
      %v968 = vpop.trf.xlu0
      %v969 = vpop.trf.xlu0
      %v970 = vpop.trf.xlu0
      %v971 = vpop.trf.xlu0
      %v972 = vpop.trf.xlu0
      %v973 = vpop.trf.xlu0
      %v974 = vpop.trf.xlu0
      %v975 = vpop.trf.xlu0
      %v976 = vpop.trf.xlu0
      %v977 = vpop.trf.xlu0
      %v978 = vpop.trf.xlu0
      %v979 = vpack.c.bf16 %v963, %v963
      %v980 = vld [vmem:[%s3] sm:$0xf]
      %v981 = vld [vmem:[%s3 + $0x4] sm:$0xf]
      %v982 = vld [vmem:[%s3 + $0x8] sm:$0xf]
      %v983 = vld [vmem:[%s3 + $0xc] sm:$0xf]
      %v988 = vunpack.c.l.b16 %v980
      %v989 = vunpack.c.l.b16 %v981
      %v990 = vunpack.c.l.b16 %v982
      %v991 = vunpack.c.l.b16 %v983
      %v992 = vpack.c.b16 %v989, %v988
      %v993 = vpack.c.b16 %v991, %v990
      %v997 = vsel %vm223, %v979, 0
      %999 = vmatprep.subr.bf16.mxu0 0
      %1000 = vmatpush1.bf16.msra.mxu0 %v992
      %1001 = vmatprep.subr.bf16.mxu0 0
      %1002 = vmatpush1.bf16.msra.mxu0 %v993
      %1003 = vmatprep.subr.bf16.mxu0 0
      %1004 = vmatpush1.bf16.msra.mxu0 0
      %1005 = vmatprep.subr.bf16.mxu0 0
      %1006 = vmatpush1.bf16.msra.mxu0 0
      %1007 = vmatprep.subr.bf16.mxu0 0
      %1008 = vmatpush1.bf16.msra.mxu0 0
      %1009 = vmatprep.subr.bf16.mxu0 0
      %1010 = vmatpush1.bf16.msra.mxu0 0
      %1011 = vmatprep.subr.bf16.mxu0 0
      %1012 = vmatpush1.bf16.msra.mxu0 0
      %1013 = vmatprep.subr.bf16.mxu0 0
      %1014 = vmatpush1.bf16.msra.mxu0 0
      %1015 = vmatprep.subr.bf16.mxu0 0
      %1016 = vmatpush1.bf16.msra.mxu0 0
      %1017 = vmatprep.subr.bf16.mxu0 0
      %1018 = vmatpush1.bf16.msra.mxu0 0
      %1019 = vmatprep.subr.bf16.mxu0 0
      %1020 = vmatpush1.bf16.msra.mxu0 0
      %1021 = vmatprep.subr.bf16.mxu0 0
      %1022 = vmatpush1.bf16.msra.mxu0 0
      %1023 = vmatprep.subr.bf16.mxu0 0
      %1024 = vmatpush1.bf16.msra.mxu0 0
      %1025 = vmatprep.subr.bf16.mxu0 0
      %1026 = vmatpush1.bf16.msra.mxu0 0
      %1027 = vmatprep.subr.bf16.mxu0 0
      %1028 = vmatpush1.bf16.msra.mxu0 0
      %1029 = vmatprep.subr.bf16.mxu0 0
      %1030 = vmatpush1.bf16.msra.mxu0 0
      %1031 = vmatprep.mubr.bf16.mxu0 0
      %1032 = vmatmul.mubr.bf16.gmra.mrb[0].mxu0 %v997
      %v1033 = vpop.f32.mrb[0].mxu0
      %v1034 = vadd.f32 0.0, %v1033
      %v1035 = vpop.f32.mrb[0].mxu0
      %v1036 = vpop.f32.mrb[0].mxu0
      %v1037 = vpop.f32.mrb[0].mxu0
      %1038 = vdwg.mxu0
      %v1039 = vadd.f32 %v221, %v1034
      %1040 = vst.msk [vmem:[%s219] sm:$0xff] %vm223, %v1039
      %p1041 = scmp.lt.s32.totalorder %s16, 1
      %s1042 = scalar_select %p1041, %s16, 1
      %s1043 = smul.addr %s1042, 8
      %s1044 = scalar_lea.vmem %s5, %s1043
      // Predicated region
      $region41: #{t5_layer_self_attention.1} parent=39 // pred_check
        %p1045 = pneg %p144
      $region42: #{t5_layer_self_attention.1} parent=39 // pred_check_branch
        %1047 = sbr.rel (%p1045) target = $region44
      $region43: #{t5_layer_self_attention.1} parent=39 // pred_region
        _
      $region44: #{t5_layer_self_attention.1} parent=39 // pred_fallthru
        _
    $region40: #{t5_layer_self_attention.1} parent=5 // pred_fallthru
      _
    %p1048 = scmp.le.s32.totalorder 2, %s11
    // Predicated region
    $region45: #{t5_layer_self_attention.1} parent=5 // pred_check
      %p1049 = pneg %p1048
    $region46: #{t5_layer_self_attention.1} parent=5 // pred_check_branch
      %1051 = sbr.rel (%p1049) target = $region48
    $region47: #{t5_layer_self_attention.1} parent=5 // pred_region
      %s1052 = ssub.s32 %s11, 2
      // Predicated region
      $region49: #{t5_layer_self_attention.1} parent=47 // pred_check
        %p1053 = pneg %p150
      $region50: #{t5_layer_self_attention.1} parent=47 // pred_check_branch
        %1055 = sbr.rel (%p1053) target = $region52
      $region51: #{t5_layer_self_attention.1} parent=47 // pred_region
        %p1056 = scmp.lt.s32.totalorder %s17, 1
        %s1057 = scalar_select %p1056, %s17, 1
        %s1058 = smul.addr %s1057, 8
        %s1059 = scalar_lea.vmem %s5, %s1058
      $region52: #{t5_layer_self_attention.1} parent=47 // pred_fallthru
        _
    $region48: #{t5_layer_self_attention.1} parent=5 // pred_fallthru
      _
  $region6: #{t5_layer_self_attention.1} parent=0 // loop_footer
    %s15 = sadd.s32 1, %s11
  $region7: #{t5_layer_self_attention.1} parent=0 // loop_footer_branch
    %10 = sbr.rel target = $region3
  $region8: #{t5_layer_self_attention.1} parent=0 // loop_exit
    _

</llo_original>
